<compile_context>
chip_gen: v6e
topology: v6e:2x2x1
jax: 0.10.0
libtpu: 0.0.40
codegen_flags: <defaults>
</compile_context>

<pallas_src>
import functools

import jax
import jax.numpy as jnp
from jax import lax
from jax.experimental import pallas as pl
from jax.experimental.pallas import tpu as pltpu

KW = 4            # kernel_size
STRIDE = 2
PAD = 1
LEAKY_SLOPE = 0.2
LANE = 128
_TARGET_M = 512   # target matmul M (= toh * Wo) per grid step
_TAIL_ELEMS = 64  # below this many output positions -> plain XLA conv


def _round_up(n, m):
    return ((n + m - 1) // m) * m


def _cdiv(a, b):
    return (a + b - 1) // b


@functools.lru_cache(maxsize=1)
def _vmem_limit_bytes():
    """Per-generation VMEM budget: ~3/4 of physical (96 MiB v5e/v6e, 48 MiB v7x)."""
    cap = None
    try:
        cap = int(pltpu.get_tpu_info().vmem_capacity_bytes)
    except Exception:
        cap = None
    if not cap or cap <= 0:
        cap = 64 * 1024 * 1024
    return int(min(cap * 3 // 4, 100 * 1024 * 1024))


# ----------------------------- Pallas kernels --------------------------------
def _patch_matmul_kernel(x_ref, w_ref, b_ref, o_ref, *, leaky_slope):
    """Small-Cin layers: full 16-tap im2col LHS, ONE MXU matmul per grid step.
      x_ref: (1, toh, Wo, 16*Cin) bf16   w_ref: (16*Cin, Coutp) bf16
      b_ref: (1, Coutp) f32              o_ref: (1, toh, Wo, Coutp)
    """
    toh, wo, coutp = o_ref.shape[1], o_ref.shape[2], o_ref.shape[3]
    k = x_ref.shape[3]
    lhs = x_ref[0].reshape(toh * wo, k)                       # M = toh*Wo
    y = jnp.dot(lhs, w_ref[...], preferred_element_type=jnp.float32)
    y = y + b_ref[...]
    if leaky_slope is not None:
        y = jnp.where(y > 0, y, leaky_slope * y)
    o_ref[0] = y.reshape(toh, wo, coutp).astype(o_ref.dtype)  # one dense store


def _s2d_conv_kernel(x_ref, xlo_ref, w_ref, b_ref, o_ref, *, leaky_slope):
    """Large-Cin layers: space-to-depth (k=2/s=1) form, 4 tap matmuls of K = 4*Cin.
      x_ref  : (1, toh, Ws, 4*Cin) bf16   s2d rows [r0, r0+toh)
      xlo_ref: (1, 1,   Ws, 4*Cin) bf16   halo s2d row r0+toh
      w_ref  : (16*Cin, Coutp)     bf16   rows [t*4C:(t+1)*4C] = tap t = 2*dr+dc
      b_ref  : (1, Coutp) f32
      o_ref  : (1, toh, Wo, Coutp)
    """
    toh, wo, coutp = o_ref.shape[1], o_ref.shape[2], o_ref.shape[3]
    k4 = x_ref.shape[3]

    xfull = jnp.concatenate([x_ref[0], xlo_ref[0]], axis=0)   # (toh+1, Ws, 4C)

    acc = None
    for t, (dr, dc) in enumerate(((0, 0), (0, 1), (1, 0), (1, 1))):
        lhs = xfull[dr:dr + toh, dc:dc + wo, :].reshape(toh * wo, k4)
        part = jnp.dot(lhs, w_ref[t * k4:(t + 1) * k4, :],
                       preferred_element_type=jnp.float32)
        acc = part if acc is None else acc + part
    y = acc + b_ref[...]                                      # f32 epilogue (v5e-safe)
    if leaky_slope is not None:
        y = jnp.where(y > 0, y, leaky_slope * y)
    o_ref[0] = y.reshape(toh, wo, coutp).astype(o_ref.dtype)


# ----------------------------- layer wrappers --------------------------------
def _conv_xla_nhwc(x_nhwc, layer, leaky_slope, out_dtype):
    """Fused XLA path: odd spatial sizes and FLOP-negligible tail layers."""
    w_hwio = jnp.transpose(layer["w_f32"], (2, 3, 1, 0)).astype(jnp.bfloat16)
    y = lax.conv_general_dilated(
        x_nhwc.astype(jnp.bfloat16), w_hwio,
        window_strides=(STRIDE, STRIDE), padding=((PAD, PAD), (PAD, PAD)),
        dimension_numbers=("NHWC", "HWIO", "NHWC"),
        preferred_element_type=jnp.float32)
    y = y + layer["b_f32"].reshape(1, 1, 1, -1)
    if leaky_slope is not None:
        y = jnp.where(y > 0, y, leaky_slope * y)
    return y.astype(out_dtype)


def _choose_toh(Ho, Wo, per_row_bytes, weight_bytes, B):
    """Row-block size: target M ~ _TARGET_M, clamped by a per-generation VMEM budget."""
    toh = max(1, min(Ho, max(1, _TARGET_M // max(Wo, 1))))
    budget = max(4 * 1024 * 1024, _vmem_limit_bytes() // 2 - weight_bytes)
    while toh > 1 and toh * per_row_bytes > budget:
        toh = max(1, toh // 2)
    # keep >=2 grid steps along the parallel axes (v7x has 2 TensorCores / chip)
    if B * _cdiv(Ho, toh) < 2 and Ho >= 2:
        toh = _cdiv(Ho, 2)
    return toh


def conv4x4_s2_pallas(x_nhwc, layer, leaky_slope, out_dtype):
    """Conv2d(kernel=4, stride=2, pad=1) [+ LeakyReLU(0.2)] via fused Pallas kernels."""
    B, H, W, C = x_nhwc.shape
    if (H % 2) or (W % 2):
        # TODO(synk): odd spatial sizes fall back to XLA (s2d needs even padded dims).
        return _conv_xla_nhwc(x_nhwc, layer, leaky_slope, out_dtype)
    Ho, Wo = H // 2, W // 2
    if B * Ho * Wo < _TAIL_ELEMS:
        # Tiny tail layers: launch/layout overhead dominates -> single fused XLA conv.
        return _conv_xla_nhwc(x_nhwc, layer, leaky_slope, out_dtype)

    w_k, bias_p, cout = layer["w_k"], layer["bias_p"], layer["cout"]
    coutp = w_k.shape[1]
    c4 = 4 * C
    assert w_k.shape[0] == 4 * c4
    Hs, Ws = Ho + 1, Wo + 1
    out_isz = jnp.dtype(out_dtype).itemsize
    weight_bytes = int(w_k.size) * 2

    # Pad + factor-2 space-to-depth; channel order (dr', dc', c).
    # TODO(synk): this is still one extra fused XLA pass (HBM read+write) over the
    # activation; writing the producer's output directly in s2d layout would remove it.
    xp = jnp.pad(x_nhwc, ((0, 0), (PAD, PAD), (PAD, PAD), (0, 0))).astype(jnp.bfloat16)
    x_s2d = (xp.reshape(B, Hs, 2, Ws, 2, C)
               .transpose(0, 1, 3, 2, 4, 5)
               .reshape(B, Hs, Ws, c4))

    use_im2col = c4 < 128          # small-Cin layers: grow K to 16*Cin, 1 dot / step
    cp = pltpu.CompilerParams(
        dimension_semantics=("parallel", "parallel"),
        vmem_limit_bytes=_vmem_limit_bytes())

    if use_im2col:
        # Full 16-tap patches; tap-major channel order matches w_k rows.
        x_in = jnp.concatenate(
            [x_s2d[:, dr:dr + Ho, dc:dc + Wo, :] for dr in (0, 1) for dc in (0, 1)],
            axis=-1)                                           # (B, Ho, Wo, 16*Cin)
        in_row = Wo * 4 * c4 * 2
        out_row = Wo * coutp * out_isz
        per_row = 3 * in_row + 2 * out_row + Wo * coutp * 4
        toh = _choose_toh(Ho, Wo, per_row, weight_bytes, B)
        nrb = _cdiv(Ho, toh)
        out = pl.pallas_call(
            functools.partial(_patch_matmul_kernel, leaky_slope=leaky_slope),
            out_shape=jax.ShapeDtypeStruct((B, Ho, Wo, coutp), out_dtype),
            grid=(B, nrb),
            in_specs=[
                pl.BlockSpec((1, toh, Wo, 4 * c4), lambda b, i: (b, i, 0, 0)),
                pl.BlockSpec((4 * c4, coutp), lambda b, i: (0, 0)),
                pl.BlockSpec((1, coutp), lambda b, i: (0, 0)),
            ],
            out_specs=pl.BlockSpec((1, toh, Wo, coutp), lambda b, i: (b, i, 0, 0)),
            compiler_params=cp,
        )(x_in, w_k, bias_p)
    else:
        in_row = Ws * c4 * 2
        out_row = Wo * coutp * out_isz
        per_row = 2 * in_row + 2 * out_row + Wo * c4 * 2 + Wo * coutp * 4
        toh = _choose_toh(Ho, Wo, per_row, weight_bytes, B)
        nrb = _cdiv(Ho, toh)
        out = pl.pallas_call(
            functools.partial(_s2d_conv_kernel, leaky_slope=leaky_slope),
            out_shape=jax.ShapeDtypeStruct((B, Ho, Wo, coutp), out_dtype),
            grid=(B, nrb),
            in_specs=[
                # main row block: s2d rows [i*toh, i*toh + toh)
                pl.BlockSpec((1, toh, Ws, c4), lambda b, i: (b, i, 0, 0)),
                # one-row halo: s2d row (i+1)*toh (clamped for the ragged last block)
                pl.BlockSpec((1, 1, Ws, c4),
                             lambda b, i: (b, jnp.minimum((i + 1) * toh, Hs - 1), 0, 0)),
                # K-major weights (VMEM-resident across the grid)
                pl.BlockSpec((4 * c4, coutp), lambda b, i: (0, 0)),
                pl.BlockSpec((1, coutp), lambda b, i: (0, 0)),
            ],
            out_specs=pl.BlockSpec((1, toh, Wo, coutp), lambda b, i: (b, i, 0, 0)),
            compiler_params=cp,
        )(x_s2d, x_s2d, w_k, bias_p)
    return out[..., :cout]          # drop cout lane padding


# --------------------- parameter setup (deterministic) ----------------------
def _spectral_normalize(w, u_key, n_power_iterations=1, eps=1e-12):
    """Mimics torch.nn.utils.spectral_norm forward at init: W / sigma."""
    cout = w.shape[0]
    w_mat = w.reshape(cout, -1)
    u = jax.random.normal(u_key, (cout,), jnp.float32)
    u = u / (jnp.linalg.norm(u) + eps)
    v = None
    for _ in range(n_power_iterations):
        v = w_mat.T @ u
        v = v / (jnp.linalg.norm(v) + eps)
        u = w_mat @ v
        u = u / (jnp.linalg.norm(u) + eps)
    sigma = u @ (w_mat @ v)
    return w / jnp.maximum(sigma, eps)


def _prep_weights(w_oihw, bias):
    """OIHW conv weights -> K-major bf16 (16*Cin, Coutp) + lane-padded f32 bias.
    Row order: tap t = 2*dr+dc major, then (dr', dc', cin) — matching the
    space-to-depth channel order used by both kernels."""
    O, C, kh, kw = w_oihw.shape
    assert kh == KW and kw == KW
    coutp = _round_up(max(O, 1), LANE)
    wt = jnp.transpose(w_oihw, (2, 3, 1, 0))        # (kh, kw, Cin, O)
    wt = wt.reshape(2, 2, 2, 2, C, O)               # (dr, dr', dc, dc', Cin, O)
    wt = jnp.transpose(wt, (0, 2, 1, 3, 4, 5))      # (dr, dc, dr', dc', Cin, O)
    wt = wt.reshape(16 * C, O)
    wt = jnp.pad(wt, ((0, 0), (0, coutp - O))).astype(jnp.bfloat16)
    bp = jnp.pad(bias, (0, coutp - O)).reshape(1, coutp).astype(jnp.float32)
    return wt, bp


def make_params(key, input_nc, ndf=8, n_layers=3):
    """Conv stack exactly as NLayerDiscriminator.__init__ builds it.
    norm_layer=BatchNorm2d => use_bias=False for all convs except the first."""
    dims = [(input_nc, ndf, True)]
    nf_mult = 1
    for n in range(1, n_layers):
        nf_prev, nf_mult = nf_mult, min(2 ** n, 8)
        dims.append((ndf * nf_prev, ndf * nf_mult, False))
    nf_prev, nf_mult = nf_mult, min(2 ** n_layers, 8)
    dims.append((ndf * nf_prev, ndf * nf_mult, False))
    dims.append((ndf * nf_mult, 1, False))

    params = []
    for cin, cout, has_bias in dims:
        key, k_w, k_b, k_u = jax.random.split(key, 4)
        fan_in = cin * KW * KW
        w = jax.random.normal(k_w, (cout, cin, KW, KW), jnp.float32) / jnp.sqrt(fan_in)
        w = _spectral_normalize(w, k_u)
        b = (jax.random.normal(k_b, (cout,), jnp.float32) * 0.01
             if has_bias else jnp.zeros((cout,), jnp.float32))
        w_k, bias_p = _prep_weights(w, b)
        params.append(dict(w_f32=w, b_f32=b, w_k=w_k, bias_p=bias_p, cout=cout))
    return params


# ------------------------------- forward ------------------------------------
def nlayer_discriminator_forward(x_nchw, params, use_sigmoid=False):
    x = jnp.transpose(x_nchw, (0, 2, 3, 1))              # NCHW -> NHWC
    n = len(params)
    for idx, layer in enumerate(params):
        last = idx == n - 1
        x = conv4x4_s2_pallas(
            x, layer,
            leaky_slope=None if last else LEAKY_SLOPE,
            out_dtype=jnp.float32 if last else jnp.bfloat16)
    if use_sigmoid:
        x = jax.nn.sigmoid(x)
    return jnp.transpose(x, (0, 3, 1, 2))                # NHWC -> NCHW


def _reference_forward(x_nchw, params):
    """bf16-matched XLA reference (same casts as the Pallas path)."""
    x = x_nchw
    n = len(params)
    for idx, layer in enumerate(params):
        last = idx == n - 1
        y = lax.conv_general_dilated(
            x.astype(jnp.bfloat16), layer["w_f32"].astype(jnp.bfloat16),
            window_strides=(STRIDE, STRIDE), padding=((PAD, PAD), (PAD, PAD)),
            dimension_numbers=("NCHW", "OIHW", "NCHW"),
            preferred_element_type=jnp.float32)
        y = y + layer["b_f32"].reshape(1, -1, 1, 1)
        if not last:
            y = jnp.where(y > 0, y, LEAKY_SLOPE * y).astype(jnp.bfloat16)
        x = y
    return x.astype(jnp.float32)


if __name__ == "__main__":
    key = jax.random.PRNGKey(0)
    k_x, k_p, k_b1, k_b2, k_b3 = jax.random.split(key, 5)

    # batch=2, input_nc=4, spatial=32 (5 stride-2 convs => 1x1), ndf=8, n_layers=3
    # channel path: 4 -> 8 -> 16 -> 32 -> 64 -> 1
    x = jax.random.normal(k_x, (2, 4, 32, 32), jnp.float32)
    params = make_params(k_p, input_nc=4, ndf=8, n_layers=3)

    fwd = jax.jit(lambda inp: nlayer_discriminator_forward(inp, params))
    out = jax.block_until_ready(fwd(x))
    assert out.shape == (2, 1, 1, 1), out.shape

    # Per-layer check of the im2col Pallas path (layers 0 and 1).
    y = jnp.transpose(x, (0, 2, 3, 1))
    for idx in range(2):
        layer = params[idx]
        y_pal = conv4x4_s2_pallas(y, layer, LEAKY_SLOPE, jnp.bfloat16)
        y_ref = _conv_xla_nhwc(y, layer, LEAKY_SLOPE, jnp.float32)
        assert jnp.allclose(y_pal.astype(jnp.float32), y_ref, atol=2e-2, rtol=2e-2), \
            f"layer {idx} mismatch"
        y = y_pal

    # Check of the large-channel s2d kernel path (ragged row blocks + halo clamp).
    xb = jax.random.normal(k_b1, (1, 18, 20, 32), jnp.float32)        # NHWC, 4*Cin = 128
    wb = jax.random.normal(k_b2, (40, 32, KW, KW), jnp.float32) / jnp.sqrt(32.0 * KW * KW)
    bb = jax.random.normal(k_b3, (40,), jnp.float32) * 0.01
    wkb, bpb = _prep_weights(wb, bb)
    layer_b = dict(w_f32=wb, b_f32=bb, w_k=wkb, bias_p=bpb, cout=40)
    yb = conv4x4_s2_pallas(xb, layer_b, LEAKY_SLOPE, jnp.bfloat16)
    yb_ref = _conv_xla_nhwc(xb, layer_b, LEAKY_SLOPE, jnp.float32)
    assert yb.shape == (1, 9, 10, 40), yb.shape
    assert jnp.allclose(yb.astype(jnp.float32), yb_ref, atol=2e-2, rtol=2e-2), \
        "s2d path mismatch"

    # Full network vs bf16-matched XLA reference.
    ref = _reference_forward(x, params)
    assert jnp.allclose(out, ref, atol=2e-2, rtol=5e-2), (out, ref)

    print("KERNEL_OK")
</pallas_src>

<mosaic_0001>
module attributes {stable_mosaic.version = 11 : i64} {
  func.func @_patch_matmul_kernel(%arg0: i32, %arg1: i32, %arg2: memref<1x16x16x64xbf16, #tpu.memory_space<vmem>>, %arg3: memref<64x128xbf16, #tpu.memory_space<vmem>>, %arg4: memref<1x128xf32, #tpu.memory_space<vmem>>, %arg5: memref<1x16x16x128xbf16, #tpu.memory_space<vmem>>) attributes {dimension_semantics = [#tpu.dimension_semantics<parallel>, #tpu.dimension_semantics<parallel>], iteration_bounds = array<i64: 2, 1>, scalar_prefetch = 0 : i64, scratch_operands = 0 : i64, tpu.core_type = #tpu.core_type<tc>, window_params = [{transform_indices = @transform_0, window_bounds = array<i64: 1, 16, 16, 64>}, {pipeline_mode = #tpu.pipeline_mode<synchronous>, transform_indices = @transform_1, window_bounds = array<i64: 64, 128>}, {pipeline_mode = #tpu.pipeline_mode<synchronous>, transform_indices = @transform_2, window_bounds = array<i64: 1, 128>}, {transform_indices = @transform_3, window_bounds = array<i64: 1, 16, 16, 128>}]} {
    %c0 = arith.constant 0 : index
    %c0_0 = arith.constant 0 : index
    %c0_1 = arith.constant 0 : index
    %c0_2 = arith.constant 0 : index
    %0 = vector.load %arg2[%c0, %c0_0, %c0_1, %c0_2] : memref<1x16x16x64xbf16, #tpu.memory_space<vmem>>, vector<1x16x16x64xbf16>
    %1 = vector.shape_cast %0 : vector<1x16x16x64xbf16> to vector<16x16x64xbf16>
    %2 = vector.shape_cast %1 : vector<16x16x64xbf16> to vector<256x64xbf16>
    %c0_3 = arith.constant 0 : index
    %c0_4 = arith.constant 0 : index
    %3 = vector.load %arg3[%c0_3, %c0_4] : memref<64x128xbf16, #tpu.memory_space<vmem>>, vector<64x128xbf16>
    %cst = arith.constant dense<0.000000e+00> : vector<256x128xf32>
    %4 = tpu.matmul %2, %3, %cst {dimension_numbers = #tpu.dot_dimension_numbers<[1], [0], [0], [1], [0, 0, 1, 1], [], []>} : vector<256x64xbf16>, vector<64x128xbf16>, vector<256x128xf32> -> vector<256x128xf32>
    %c0_5 = arith.constant 0 : index
    %c0_6 = arith.constant 0 : index
    %5 = vector.load %arg4[%c0_5, %c0_6] : memref<1x128xf32, #tpu.memory_space<vmem>>, vector<1x128xf32>
    %6 = vector.broadcast %5 : vector<1x128xf32> to vector<256x128xf32>
    %7 = arith.addf %4, %6 : vector<256x128xf32>
    %cst_7 = arith.constant 0.000000e+00 : f32
    %8 = vector.broadcast %cst_7 : f32 to vector<256x128xf32>
    %9 = arith.cmpf ogt, %7, %8 : vector<256x128xf32>
    %cst_8 = arith.constant 2.000000e-01 : f32
    %10 = vector.broadcast %cst_8 : f32 to vector<256x128xf32>
    %11 = arith.mulf %10, %7 : vector<256x128xf32>
    %12 = arith.select %9, %7, %11 : vector<256x128xi1>, vector<256x128xf32>
    %13 = vector.shape_cast %12 : vector<256x128xf32> to vector<16x16x128xf32>
    %14 = arith.truncf %13 : vector<16x16x128xf32> to vector<16x16x128xbf16>
    %c0_9 = arith.constant 0 : index
    %c0_10 = arith.constant 0 : index
    %c0_11 = arith.constant 0 : index
    %c0_12 = arith.constant 0 : index
    %15 = vector.load %arg5[%c0_9, %c0_10, %c0_11, %c0_12] : memref<1x16x16x128xbf16, #tpu.memory_space<vmem>>, vector<1x16x16x128xbf16>
    %16 = vector.shape_cast %15 : vector<1x16x16x128xbf16> to vector<16x16x128xbf16>
    %17 = vector.shape_cast %14 : vector<16x16x128xbf16> to vector<1x16x16x128xbf16>
    tpu.vector_store %arg5[%c0_9, %c0_10, %c0_11, %c0_12], %17 {strides = array<i32>} : memref<1x16x16x128xbf16, #tpu.memory_space<vmem>>, vector<1x16x16x128xbf16>,
    return
  }
  func.func @transform_0(%arg0: i32, %arg1: i32) -> (i32, i32, i32, i32) {
    %c0_i32 = arith.constant 0 : i32
    %c0_i32_0 = arith.constant 0 : i32
    %c0_i32_1 = arith.constant 0 : i32
    return %arg0, %arg1, %c0_i32, %c0_i32_0 : i32, i32, i32, i32
  }
  func.func @transform_1(%arg0: i32, %arg1: i32) -> (i32, i32) {
    %c0_i32 = arith.constant 0 : i32
    %c0_i32_0 = arith.constant 0 : i32
    %c0_i32_1 = arith.constant 0 : i32
    return %c0_i32, %c0_i32_0 : i32, i32
  }
  func.func @transform_2(%arg0: i32, %arg1: i32) -> (i32, i32) {
    %c0_i32 = arith.constant 0 : i32
    %c0_i32_0 = arith.constant 0 : i32
    %c0_i32_1 = arith.constant 0 : i32
    return %c0_i32, %c0_i32_0 : i32, i32
  }
  func.func @transform_3(%arg0: i32, %arg1: i32) -> (i32, i32, i32, i32) {
    %c0_i32 = arith.constant 0 : i32
    %c0_i32_0 = arith.constant 0 : i32
    %c0_i32_1 = arith.constant 0 : i32
    return %arg0, %arg1, %c0_i32, %c0_i32_0 : i32, i32, i32, i32
  }
}

module attributes {stable_mosaic.version = 11 : i64} {
  func.func @_patch_matmul_kernel(%arg0: i32, %arg1: i32, %arg2: memref<1x8x8x128xbf16, #tpu.memory_space<vmem>>, %arg3: memref<128x128xbf16, #tpu.memory_space<vmem>>, %arg4: memref<1x128xf32, #tpu.memory_space<vmem>>, %arg5: memref<1x8x8x128xbf16, #tpu.memory_space<vmem>>) attributes {dimension_semantics = [#tpu.dimension_semantics<parallel>, #tpu.dimension_semantics<parallel>], iteration_bounds = array<i64: 2, 1>, scalar_prefetch = 0 : i64, scratch_operands = 0 : i64, tpu.core_type = #tpu.core_type<tc>, window_params = [{transform_indices = @transform_0, window_bounds = array<i64: 1, 8, 8, 128>}, {pipeline_mode = #tpu.pipeline_mode<synchronous>, transform_indices = @transform_1, window_bounds = array<i64: 128, 128>}, {pipeline_mode = #tpu.pipeline_mode<synchronous>, transform_indices = @transform_2, window_bounds = array<i64: 1, 128>}, {transform_indices = @transform_3, window_bounds = array<i64: 1, 8, 8, 128>}]} {
    %c0 = arith.constant 0 : index
    %c0_0 = arith.constant 0 : index
    %c0_1 = arith.constant 0 : index
    %c0_2 = arith.constant 0 : index
    %0 = vector.load %arg2[%c0, %c0_0, %c0_1, %c0_2] : memref<1x8x8x128xbf16, #tpu.memory_space<vmem>>, vector<1x8x8x128xbf16>
    %1 = vector.shape_cast %0 : vector<1x8x8x128xbf16> to vector<8x8x128xbf16>
    %2 = vector.shape_cast %1 : vector<8x8x128xbf16> to vector<64x128xbf16>
    %c0_3 = arith.constant 0 : index
    %c0_4 = arith.constant 0 : index
    %3 = vector.load %arg3[%c0_3, %c0_4] : memref<128x128xbf16, #tpu.memory_space<vmem>>, vector<128x128xbf16>
    %cst = arith.constant dense<0.000000e+00> : vector<64x128xf32>
    %4 = tpu.matmul %2, %3, %cst {dimension_numbers = #tpu.dot_dimension_numbers<[1], [0], [0], [1], [0, 0, 1, 1], [], []>} : vector<64x128xbf16>, vector<128x128xbf16>, vector<64x128xf32> -> vector<64x128xf32>
    %c0_5 = arith.constant 0 : index
    %c0_6 = arith.constant 0 : index
    %5 = vector.load %arg4[%c0_5, %c0_6] : memref<1x128xf32, #tpu.memory_space<vmem>>, vector<1x128xf32>
    %6 = vector.broadcast %5 : vector<1x128xf32> to vector<64x128xf32>
    %7 = arith.addf %4, %6 : vector<64x128xf32>
    %cst_7 = arith.constant 0.000000e+00 : f32
    %8 = vector.broadcast %cst_7 : f32 to vector<64x128xf32>
    %9 = arith.cmpf ogt, %7, %8 : vector<64x128xf32>
    %cst_8 = arith.constant 2.000000e-01 : f32
    %10 = vector.broadcast %cst_8 : f32 to vector<64x128xf32>
    %11 = arith.mulf %10, %7 : vector<64x128xf32>
    %12 = arith.select %9, %7, %11 : vector<64x128xi1>, vector<64x128xf32>
    %13 = vector.shape_cast %12 : vector<64x128xf32> to vector<8x8x128xf32>
    %14 = arith.truncf %13 : vector<8x8x128xf32> to vector<8x8x128xbf16>
    %c0_9 = arith.constant 0 : index
    %c0_10 = arith.constant 0 : index
    %c0_11 = arith.constant 0 : index
    %c0_12 = arith.constant 0 : index
    %15 = vector.load %arg5[%c0_9, %c0_10, %c0_11, %c0_12] : memref<1x8x8x128xbf16, #tpu.memory_space<vmem>>, vector<1x8x8x128xbf16>
    %16 = vector.shape_cast %15 : vector<1x8x8x128xbf16> to vector<8x8x128xbf16>
    %17 = vector.shape_cast %14 : vector<8x8x128xbf16> to vector<1x8x8x128xbf16>
    tpu.vector_store %arg5[%c0_9, %c0_10, %c0_11, %c0_12], %17 {strides = array<i32>} : memref<1x8x8x128xbf16, #tpu.memory_space<vmem>>, vector<1x8x8x128xbf16>,
    return
  }
  func.func @transform_0(%arg0: i32, %arg1: i32) -> (i32, i32, i32, i32) {
    %c0_i32 = arith.constant 0 : i32
    %c0_i32_0 = arith.constant 0 : i32
    %c0_i32_1 = arith.constant 0 : i32
    return %arg0, %arg1, %c0_i32, %c0_i32_0 : i32, i32, i32, i32
  }
  func.func @transform_1(%arg0: i32, %arg1: i32) -> (i32, i32) {
    %c0_i32 = arith.constant 0 : i32
    %c0_i32_0 = arith.constant 0 : i32
    %c0_i32_1 = arith.constant 0 : i32
    return %c0_i32, %c0_i32_0 : i32, i32
  }
  func.func @transform_2(%arg0: i32, %arg1: i32) -> (i32, i32) {
    %c0_i32 = arith.constant 0 : i32
    %c0_i32_0 = arith.constant 0 : i32
    %c0_i32_1 = arith.constant 0 : i32
    return %c0_i32, %c0_i32_0 : i32, i32
  }
  func.func @transform_3(%arg0: i32, %arg1: i32) -> (i32, i32, i32, i32) {
    %c0_i32 = arith.constant 0 : i32
    %c0_i32_0 = arith.constant 0 : i32
    %c0_i32_1 = arith.constant 0 : i32
    return %arg0, %arg1, %c0_i32, %c0_i32_0 : i32, i32, i32, i32
  }
}

</mosaic_0001>

<llo_original>
// kernel: _lambda_.2
$region0: #{_lambda_.2}
  #allocation0 [shape = 'u32[]', space=smem, size = 0x4, offset = 0x4, fixed_abs, tag = 'smem constant byte address 0x4 - core index']
  #allocation1 [shape = 'u32[144,128]{1,0:T(1,128)}', space=vmem, size = 0x12000, scoped, tag = 'internal scratch']
  %s0 = inlined_call_operand.vmem [shape: bf16[2,16,16,64], index: 0, kind: input, shape index: {}]
  %s1 = inlined_call_operand.vmem [shape: bf16[64,128], index: 1, kind: input, shape index: {}]
  %s2 = inlined_call_operand.vmem [shape: f32[1,128], index: 2, kind: input, shape index: {}]
  %s3 = inlined_call_operand.vmem [shape: bf16[2,16,16,128], index: 3, kind: output, shape index: {}]
  %s4 = sld [smem:[#allocation0]]
  $region45: #{_lambda_.2} parent=0
    _
  %s6 = ssub.s32 1, %s4
  %s7 = scalar_select 0, %s6, %s4
  loop: start=0, step=1, limit=4
  $region2: #{_lambda_.2} parent=0 // loop_pre_header
    _
  $region3: #{_lambda_.2} parent=0 // loop_header
    %s9 = sphi 0, %s13
    %p10 = scmp.ge.s32.totalorder %s9, 4
    %s16 = sphi 0, %s28
    %s17 = sphi 0, %s24
    %s18 = sphi 0, %s16
    %s19 = sphi 0, %s17
    %s20 = sphi 0, %s18
    %s21 = sphi 0, %s19
    %s33 = sphi 0, %s35
    %s36 = sphi 0, %s33
    %s37 = sphi 0, %s36
    %s53 = sphi 0, %s37
    %s57 = sphi 0, %s57
    %s59 = sphi 0, %s57
    %s60 = sphi 0, %s59
    %s74 = sphi 0, %s60
    %s78 = sphi 0, %s78
    %s80 = sphi 0, %s78
    %s81 = sphi 0, %s80
    %s95 = sphi 0, %s81
    %s103 = sphi 0, %s105
    %s106 = sphi 0, %s103
    %s107 = sphi 0, %s106
    %s123 = sphi 0, %s107
  $region4: #{_lambda_.2} parent=0 // loop_header_branch
    %12 = sbr.rel (%p10) target = $region8
  $region5: #{_lambda_.2} parent=0 // loop_body
    %s14 = ssub.s32 %s9, 1
    %s15 = ssub.s32 %s9, 2
    %s22 = sadd.s32 1, %s17
    %p23 = scmp.ge.s32.totalorder %s22, 1
    %s24 = scalar_select %p23, 0, %s22
    %s25 = sadd.s32 1, %s16
    %s26 = scalar_select %p23, %s25, %s16
    %p27 = scmp.ge.s32.totalorder %s26, 2
    %s28 = scalar_select %p27, 0, %s26
    %s29 = ssub.s32 %s16, %s28
    %s30 = ssub.s32 %s17, %s24
    %s31 = sor.u32 %s29, %s30
    %p32 = scmp.eq.s32.totalorder %s31, 0
    %s34 = sadd.s32 %s33, 1
    %s35 = scalar_select %p32, %s33, %s34
    %p38 = pneg %p32
    %p39 = scmp.eq.s32.totalorder %s9, 1
    %p40 = por %p38, %p39
    %p41 = scmp.ne.s32.totalorder %s33, %s36
    %p42 = scmp.eq.s32.totalorder %s9, 0
    %p43 = por %p41, %p42
    %p44 = scmp.ne.s32.totalorder %s33, %s36
    %p45 = scmp.eq.s32.totalorder %s14, 1
    %p46 = por %p44, %p45
    %p47 = scmp.ne.s32.totalorder %s36, %s37
    %p48 = scmp.eq.s32.totalorder %s14, 0
    %p49 = por %p47, %p48
    %p50 = scmp.ne.s32.totalorder %s36, %s37
    %p51 = scmp.eq.s32.totalorder %s15, 1
    %p52 = por %p50, %p51
    %p54 = scmp.ne.s32.totalorder %s37, %s53
    %p55 = scmp.eq.s32.totalorder %s15, 0
    %p56 = por %p54, %p55
    %s58 = sadd.s32 %s57, 1
    %p61 = scmp.eq.s32.totalorder %s9, 1
    %p62 = scmp.ne.s32.totalorder %s57, %s59
    %p63 = scmp.eq.s32.totalorder %s9, 0
    %p64 = por %p62, %p63
    %p65 = scmp.ne.s32.totalorder %s57, %s59
    %p66 = scmp.eq.s32.totalorder %s14, 1
    %p67 = por %p65, %p66
    %p68 = scmp.ne.s32.totalorder %s59, %s60
    %p69 = scmp.eq.s32.totalorder %s14, 0
    %p70 = por %p68, %p69
    %p71 = scmp.ne.s32.totalorder %s59, %s60
    %p72 = scmp.eq.s32.totalorder %s15, 1
    %p73 = por %p71, %p72
    %p75 = scmp.ne.s32.totalorder %s60, %s74
    %p76 = scmp.eq.s32.totalorder %s15, 0
    %p77 = por %p75, %p76
    %s79 = sadd.s32 %s78, 1
    %p82 = scmp.eq.s32.totalorder %s9, 1
    %p83 = scmp.ne.s32.totalorder %s78, %s80
    %p84 = scmp.eq.s32.totalorder %s9, 0
    %p85 = por %p83, %p84
    %p86 = scmp.ne.s32.totalorder %s78, %s80
    %p87 = scmp.eq.s32.totalorder %s14, 1
    %p88 = por %p86, %p87
    %p89 = scmp.ne.s32.totalorder %s80, %s81
    %p90 = scmp.eq.s32.totalorder %s14, 0
    %p91 = por %p89, %p90
    %p92 = scmp.ne.s32.totalorder %s80, %s81
    %p93 = scmp.eq.s32.totalorder %s15, 1
    %p94 = por %p92, %p93
    %p96 = scmp.ne.s32.totalorder %s81, %s95
    %p97 = scmp.eq.s32.totalorder %s15, 0
    %p98 = por %p96, %p97
    %s99 = ssub.s32 %s16, %s28
    %s100 = ssub.s32 %s17, %s24
    %s101 = sor.u32 %s99, %s100
    %p102 = scmp.eq.s32.totalorder %s101, 0
    %s104 = sadd.s32 %s103, 1
    %s105 = scalar_select %p102, %s103, %s104
    %p108 = pneg %p102
    %p109 = scmp.eq.s32.totalorder %s9, 1
    %p110 = por %p108, %p109
    %p111 = scmp.ne.s32.totalorder %s103, %s106
    %p112 = scmp.eq.s32.totalorder %s9, 0
    %p113 = por %p111, %p112
    %p114 = scmp.ne.s32.totalorder %s103, %s106
    %p115 = scmp.eq.s32.totalorder %s14, 1
    %p116 = por %p114, %p115
    %p117 = scmp.ne.s32.totalorder %s106, %s107
    %p118 = scmp.eq.s32.totalorder %s14, 0
    %p119 = por %p117, %p118
    %p120 = scmp.ne.s32.totalorder %s106, %s107
    %p121 = scmp.eq.s32.totalorder %s15, 1
    %p122 = por %p120, %p121
    %p124 = scmp.ne.s32.totalorder %s107, %s123
    %p125 = scmp.eq.s32.totalorder %s15, 0
    %p126 = por %p124, %p125
    %p127 = scmp.le.s32.totalorder 1, %s9
    %p128 = scmp.lt.s32.totalorder %s9, 3
    %p129 = pnand %p127, %p128
    %p130 = pneg %p129
    // Predicated region
    $region9: #{_lambda_.2} parent=5 // pred_check
      _
    $region10: #{_lambda_.2} parent=5 // pred_check_branch
      %132 = sbr.rel (%p129) target = $region12
    $region11: #{_lambda_.2} parent=5 // pred_region
      %s133 = ssub.s32 %s9, 1
      // Predicated region
      $region13: #{_lambda_.2} parent=11 // pred_check
        %p134 = pneg %p70
      $region14: #{_lambda_.2} parent=11 // pred_check_branch
        %136 = sbr.rel (%p134) target = $region16
      $region15: #{_lambda_.2} parent=11 // pred_region
        _
      $region16: #{_lambda_.2} parent=11 // pred_fallthru
        _
      // Predicated region
      $region17: #{_lambda_.2} parent=11 // pred_check
        %p137 = pneg %p91
      $region18: #{_lambda_.2} parent=11 // pred_check_branch
        %139 = sbr.rel (%p137) target = $region20
      $region19: #{_lambda_.2} parent=11 // pred_region
        _
      $region20: #{_lambda_.2} parent=11 // pred_fallthru
        _
    $region12: #{_lambda_.2} parent=5 // pred_fallthru
      _
    %p140 = scmp.lt.s32.totalorder %s9, 2
    // Predicated region
    $region21: #{_lambda_.2} parent=5 // pred_check
      %p141 = pneg %p140
    $region22: #{_lambda_.2} parent=5 // pred_check_branch
      %143 = sbr.rel (%p141) target = $region24
    $region23: #{_lambda_.2} parent=5 // pred_region
      // Predicated region
      $region25: #{_lambda_.2} parent=23 // pred_check
        %p144 = pneg %p43
      $region26: #{_lambda_.2} parent=23 // pred_check_branch
        %146 = sbr.rel (%p144) target = $region28
      $region27: #{_lambda_.2} parent=23 // pred_region
        %s147 = smul.u32 16, %s17
        %p148 = scmp.lt.s32.totalorder %s16, 1
        %s149 = scalar_select %p148, %s16, 1
        %p150 = scmp.lt.s32.totalorder %s147, 15
        %s151 = scalar_select %p150, %s147, 15
        %s152 = smul.addr %s151, 2
        %s153 = smul.addr %s149, 32
        %s154 = sadd.s32 %s152, %s153
        %s155 = smul.addr %s154, 4
        %s156 = scalar_lea.vmem %s0, %s155
        %s157 = smul.u32 16, %s17
      $region28: #{_lambda_.2} parent=23 // pred_fallthru
        _
    $region24: #{_lambda_.2} parent=5 // pred_fallthru
      _
    %p158 = scmp.le.s32.totalorder 1, %s9
    %p159 = scmp.lt.s32.totalorder %s9, 3
    %p160 = pnand %p158, %p159
    %p161 = pneg %p160
    // Predicated region
    $region29: #{_lambda_.2} parent=5 // pred_check
      _
    $region30: #{_lambda_.2} parent=5 // pred_check_branch
      %163 = sbr.rel (%p160) target = $region32
    $region31: #{_lambda_.2} parent=5 // pred_region
      %s164 = ssub.s32 %s9, 1
      %s165 = smul.u32 16, %s19
      %p166 = scmp.lt.s32.totalorder %s18, 1
      %s167 = scalar_select %p166, %s18, 1
      %p168 = scmp.lt.s32.totalorder %s165, 15
      %s169 = scalar_select %p168, %s165, 15
      %s170 = smul.addr %s169, 2
      %s171 = smul.addr %s167, 32
      %s172 = sadd.s32 %s170, %s171
      %s173 = smul.addr %s172, 4
      %s174 = scalar_lea.vmem %s0, %s173
      %p175 = pneg %p49
      %p176 = pneg %p46
      %p177 = pneg %p70
      %p178 = pneg %p67
      %p179 = pneg %p91
      %p180 = pneg %p88
      %p181 = pneg %p119
      %p182 = pneg %p116
      %s183 = smul.u32 16, %s19
      %p184 = scmp.lt.s32.totalorder %s18, 1
      %s185 = scalar_select %p184, %s18, 1
      %p186 = scmp.lt.s32.totalorder %s183, 15
      %s187 = scalar_select %p186, %s183, 15
      %s188 = smul.addr %s187, 2
      %s189 = smul.addr %s185, 32
      %s190 = sadd.s32 %s188, %s189
      %s191 = smul.addr %s190, 4
      %s192 = scalar_lea.vmem %s3, %s191
      %s193 = smul.u32 16, %s19
      %p194 = scmp.lt.s32.totalorder %s18, 1
      %s195 = scalar_select %p194, %s18, 1
      %p196 = scmp.lt.s32.totalorder %s193, 15
      %s197 = scalar_select %p196, %s193, 15
      %s198 = smul.addr %s197, 2
      %s199 = smul.addr %s195, 32
      %s200 = sadd.s32 %s198, %s199
      %s201 = smul.addr %s200, 4
      %s202 = scalar_lea.vmem %s0, %s201
      %s203 = smul.u32 16, %s19
      %s204 = smul.u32 16, %s19
      %p205 = scmp.lt.s32.totalorder %s18, 1
      %s206 = scalar_select %p205, %s18, 1
      %p207 = scmp.lt.s32.totalorder %s204, 15
      %s208 = scalar_select %p207, %s204, 15
      %s209 = smul.addr %s208, 2
      %s210 = smul.addr %s206, 32
      %s211 = sadd.s32 %s209, %s210
      %s212 = smul.addr %s211, 4
      %s213 = scalar_lea.vmem %s3, %s212
      %s214 = smul.u32 16, %s19
      %v216 = vld [vmem:[%s202] sm:$0xf]
      %v217 = vld [vmem:[%s202 + $0x4] sm:$0xf]
      %v218 = vld [vmem:[%s202 + $0x8] sm:$0xf]
      %v219 = vld [vmem:[%s202 + $0xc] sm:$0xf]
      %v220 = vld [vmem:[%s202 + $0x10] sm:$0xf]
      %v221 = vld [vmem:[%s202 + $0x14] sm:$0xf]
      %v222 = vld [vmem:[%s202 + $0x18] sm:$0xf]
      %v223 = vld [vmem:[%s202 + $0x1c] sm:$0xf]
      %v224 = vld [vmem:[%s202 + $0x20] sm:$0xf]
      %v225 = vld [vmem:[%s202 + $0x24] sm:$0xf]
      %v226 = vld [vmem:[%s202 + $0x28] sm:$0xf]
      %v227 = vld [vmem:[%s202 + $0x2c] sm:$0xf]
      %v228 = vld [vmem:[%s202 + $0x30] sm:$0xf]
      %v229 = vld [vmem:[%s202 + $0x34] sm:$0xf]
      %v230 = vld [vmem:[%s202 + $0x38] sm:$0xf]
      %v231 = vld [vmem:[%s202 + $0x3c] sm:$0xf]
      %v232 = vld [vmem:[%s202 + $0x40] sm:$0xf]
      %v233 = vld [vmem:[%s202 + $0x44] sm:$0xf]
      %v234 = vld [vmem:[%s202 + $0x48] sm:$0xf]
      %v235 = vld [vmem:[%s202 + $0x4c] sm:$0xf]
      %v236 = vld [vmem:[%s202 + $0x50] sm:$0xf]
      %v237 = vld [vmem:[%s202 + $0x54] sm:$0xf]
      %v238 = vld [vmem:[%s202 + $0x58] sm:$0xf]
      %v239 = vld [vmem:[%s202 + $0x5c] sm:$0xf]
      %v240 = vld [vmem:[%s202 + $0x60] sm:$0xf]
      %v241 = vld [vmem:[%s202 + $0x64] sm:$0xf]
      %v242 = vld [vmem:[%s202 + $0x68] sm:$0xf]
      %v243 = vld [vmem:[%s202 + $0x6c] sm:$0xf]
      %v244 = vld [vmem:[%s202 + $0x70] sm:$0xf]
      %v245 = vld [vmem:[%s202 + $0x74] sm:$0xf]
      %v246 = vld [vmem:[%s202 + $0x78] sm:$0xf]
      %v247 = vld [vmem:[%s202 + $0x7c] sm:$0xf]
      %v248 = vld [vmem:[%s1] sm:$0xf]
      %v249 = vld [vmem:[%s1 + $0x4] sm:$0xf]
      %v250 = vld [vmem:[%s1 + $0x8] sm:$0xf]
      %v251 = vld [vmem:[%s1 + $0xc] sm:$0xf]
      %v252 = vld [vmem:[%s1 + $0x10] sm:$0xf]
      %v253 = vld [vmem:[%s1 + $0x14] sm:$0xf]
      %v254 = vld [vmem:[%s1 + $0x18] sm:$0xf]
      %v255 = vld [vmem:[%s1 + $0x1c] sm:$0xf]
      %v256 = vld [vmem:[%s2] sm:$0x1]
      %v258 = vlaneseq
      %v259 = vshrl.u32 %v258, 7
      %v260 = vsub.s32 0, %v259
      %v261 = vrot.slane %v256, %v260
      %v295 = vunpack.c.l.b16 %v216
      %v296 = vunpack.c.l.b16 %v217
      %v297 = vunpack.c.l.b16 %v218
      %v298 = vunpack.c.l.b16 %v219
      %v299 = vunpack.c.l.b16 %v220
      %v300 = vunpack.c.l.b16 %v221
      %v301 = vunpack.c.l.b16 %v222
      %v302 = vunpack.c.l.b16 %v223
      %v303 = vunpack.c.l.b16 %v224
      %v304 = vunpack.c.l.b16 %v225
      %v305 = vunpack.c.l.b16 %v226
      %v306 = vunpack.c.l.b16 %v227
      %v307 = vunpack.c.l.b16 %v228
      %v308 = vunpack.c.l.b16 %v229
      %v309 = vunpack.c.l.b16 %v230
      %v310 = vunpack.c.l.b16 %v231
      %v311 = vunpack.c.l.b16 %v232
      %v312 = vunpack.c.l.b16 %v233
      %v313 = vunpack.c.l.b16 %v234
      %v314 = vunpack.c.l.b16 %v235
      %v315 = vunpack.c.l.b16 %v236
      %v316 = vunpack.c.l.b16 %v237
      %v317 = vunpack.c.l.b16 %v238
      %v318 = vunpack.c.l.b16 %v239
      %v319 = vunpack.c.l.b16 %v240
      %v320 = vunpack.c.l.b16 %v241
      %v321 = vunpack.c.l.b16 %v242
      %v322 = vunpack.c.l.b16 %v243
      %v323 = vunpack.c.l.b16 %v244
      %v324 = vunpack.c.l.b16 %v245
      %v325 = vunpack.c.l.b16 %v246
      %v326 = vunpack.c.l.b16 %v247
      %v327 = vpack.c.b16 %v296, %v295
      %v328 = vpack.c.b16 %v298, %v297
      %v329 = vpack.c.b16 %v300, %v299
      %v330 = vpack.c.b16 %v302, %v301
      %v331 = vpack.c.b16 %v304, %v303
      %v332 = vpack.c.b16 %v306, %v305
      %v333 = vpack.c.b16 %v308, %v307
      %v334 = vpack.c.b16 %v310, %v309
      %v335 = vpack.c.b16 %v312, %v311
      %v336 = vpack.c.b16 %v314, %v313
      %v337 = vpack.c.b16 %v316, %v315
      %v338 = vpack.c.b16 %v318, %v317
      %v339 = vpack.c.b16 %v320, %v319
      %v340 = vpack.c.b16 %v322, %v321
      %v341 = vpack.c.b16 %v324, %v323
      %v342 = vpack.c.b16 %v326, %v325
      %v351 = vunpack.c.l.b16 %v248
      %v352 = vunpack.c.l.b16 %v249
      %v353 = vunpack.c.l.b16 %v250
      %v354 = vunpack.c.l.b16 %v251
      %v355 = vunpack.c.l.b16 %v252
      %v356 = vunpack.c.l.b16 %v253
      %v357 = vunpack.c.l.b16 %v254
      %v358 = vunpack.c.l.b16 %v255
      %v359 = vpack.c.b16 %v352, %v351
      %v360 = vpack.c.b16 %v354, %v353
      %v361 = vpack.c.b16 %v356, %v355
      %v362 = vpack.c.b16 %v358, %v357
      %vm367 = vcmask 523264
      %v369 = vsel %vm367, %v327, 0
      %v372 = vsel %vm367, %v328, 0
      %v375 = vsel %vm367, %v329, 0
      %v378 = vsel %vm367, %v330, 0
      %v381 = vsel %vm367, %v331, 0
      %v384 = vsel %vm367, %v332, 0
      %v387 = vsel %vm367, %v333, 0
      %v390 = vsel %vm367, %v334, 0
      %v393 = vsel %vm367, %v335, 0
      %v396 = vsel %vm367, %v336, 0
      %v399 = vsel %vm367, %v337, 0
      %v402 = vsel %vm367, %v338, 0
      %v405 = vsel %vm367, %v339, 0
      %v408 = vsel %vm367, %v340, 0
      %v411 = vsel %vm367, %v341, 0
      %v414 = vsel %vm367, %v342, 0
      %416 = vmatprep.subr.bf16.mxu0 0
      %417 = vmatpush1.bf16.msra.mxu0 0
      %418 = vmatprep.subr.bf16.mxu0 0
      %419 = vmatpush1.bf16.msra.mxu0 0
      %420 = vmatprep.subr.bf16.mxu0 0
      %421 = vmatpush1.bf16.msra.mxu0 0
      %422 = vmatprep.subr.bf16.mxu0 0
      %423 = vmatpush1.bf16.msra.mxu0 0
      %424 = vmatprep.subr.bf16.mxu0 0
      %425 = vmatpush1.bf16.msra.mxu0 %v362
      %426 = vmatprep.subr.bf16.mxu0 0
      %427 = vmatpush1.bf16.msra.mxu0 %v361
      %428 = vmatprep.subr.bf16.mxu0 0
      %429 = vmatpush1.bf16.msra.mxu0 %v360
      %430 = vmatprep.subr.bf16.mxu0 0
      %431 = vmatpush1.bf16.msra.mxu0 %v359
      %432 = vmatprep.subr.bf16.mxu0 0
      %433 = vmatpush2.bf16.msra.mxu0 0
      %434 = vmatprep.subr.bf16.mxu0 0
      %435 = vmatpush2.bf16.msra.mxu0 0
      %436 = vmatprep.subr.bf16.mxu0 0
      %437 = vmatpush2.bf16.msra.mxu0 0
      %438 = vmatprep.subr.bf16.mxu0 0
      %439 = vmatpush2.bf16.msra.mxu0 0
      %440 = vmatprep.subr.bf16.mxu0 0
      %441 = vmatpush2.bf16.msra.mxu0 0
      %442 = vmatprep.subr.bf16.mxu0 0
      %443 = vmatpush2.bf16.msra.mxu0 0
      %444 = vmatprep.subr.bf16.mxu0 0
      %445 = vmatpush2.bf16.msra.mxu0 0
      %446 = vmatprep.subr.bf16.mxu0 0
      %447 = vmatpush2.bf16.msra.mxu0 0
      %448 = vmatprep.mubr.bf16.mxu0 0
      %449 = vmatmul.mubr.bf16.gmra.mxu0 %v369
      %v450 = vpop.f32.mrf.mxu0
      %v451 = vadd.f32 %v261, %v450
      %v452 = vpop.f32.mrf.mxu0
      %v453 = vpop.f32.mrf.mxu0
      %v454 = vadd.f32 %v261, %v453
      %v455 = vpop.f32.mrf.mxu0
      %456 = vmatprep.mubr.bf16.mxu0 0
      %457 = vmatmul.mubr.bf16.gmra.mxu0 %v372
      %v458 = vpop.f32.mrf.mxu0
      %v459 = vadd.f32 %v261, %v458
      %v460 = vpop.f32.mrf.mxu0
      %v461 = vpop.f32.mrf.mxu0
      %v462 = vadd.f32 %v261, %v461
      %v463 = vpop.f32.mrf.mxu0
      %464 = vmatprep.mubr.bf16.mxu0 0
      %465 = vmatmul.mubr.bf16.gmra.mxu0 %v375
      %v466 = vpop.f32.mrf.mxu0
      %v467 = vadd.f32 %v261, %v466
      %v468 = vpop.f32.mrf.mxu0
      %v469 = vpop.f32.mrf.mxu0
      %v470 = vadd.f32 %v261, %v469
      %v471 = vpop.f32.mrf.mxu0
      %472 = vmatprep.mubr.bf16.mxu0 0
      %473 = vmatmul.mubr.bf16.gmra.mxu0 %v378
      %v474 = vpop.f32.mrf.mxu0
      %v475 = vadd.f32 %v261, %v474
      %v476 = vpop.f32.mrf.mxu0
      %v477 = vpop.f32.mrf.mxu0
      %v478 = vadd.f32 %v261, %v477
      %v479 = vpop.f32.mrf.mxu0
      %480 = vmatprep.mubr.bf16.mxu0 0
      %481 = vmatmul.mubr.bf16.gmra.mxu0 %v381
      %v482 = vpop.f32.mrf.mxu0
      %v483 = vadd.f32 %v261, %v482
      %v484 = vpop.f32.mrf.mxu0
      %v485 = vpop.f32.mrf.mxu0
      %v486 = vadd.f32 %v261, %v485
      %v487 = vpop.f32.mrf.mxu0
      %488 = vmatprep.mubr.bf16.mxu0 0
      %489 = vmatmul.mubr.bf16.gmra.mxu0 %v384
      %v490 = vpop.f32.mrf.mxu0
      %v491 = vadd.f32 %v261, %v490
      %v492 = vpop.f32.mrf.mxu0
      %v493 = vpop.f32.mrf.mxu0
      %v494 = vadd.f32 %v261, %v493
      %v495 = vpop.f32.mrf.mxu0
      %496 = vmatprep.mubr.bf16.mxu0 0
      %497 = vmatmul.mubr.bf16.gmra.mxu0 %v387
      %v498 = vpop.f32.mrf.mxu0
      %v499 = vadd.f32 %v261, %v498
      %v500 = vpop.f32.mrf.mxu0
      %v501 = vpop.f32.mrf.mxu0
      %v502 = vadd.f32 %v261, %v501
      %v503 = vpop.f32.mrf.mxu0
      %504 = vmatprep.mubr.bf16.mxu0 0
      %505 = vmatmul.mubr.bf16.gmra.mxu0 %v390
      %v506 = vpop.f32.mrf.mxu0
      %v507 = vadd.f32 %v261, %v506
      %v508 = vpop.f32.mrf.mxu0
      %v509 = vpop.f32.mrf.mxu0
      %v510 = vadd.f32 %v261, %v509
      %v511 = vpop.f32.mrf.mxu0
      %512 = vmatprep.mubr.bf16.mxu0 0
      %513 = vmatmul.mubr.bf16.gmra.mxu0 %v393
      %v514 = vpop.f32.mrf.mxu0
      %v515 = vadd.f32 %v261, %v514
      %v516 = vpop.f32.mrf.mxu0
      %v517 = vpop.f32.mrf.mxu0
      %v518 = vadd.f32 %v261, %v517
      %v519 = vpop.f32.mrf.mxu0
      %520 = vmatprep.mubr.bf16.mxu0 0
      %521 = vmatmul.mubr.bf16.gmra.mxu0 %v396
      %v522 = vpop.f32.mrf.mxu0
      %v523 = vadd.f32 %v261, %v522
      %v524 = vpop.f32.mrf.mxu0
      %v525 = vpop.f32.mrf.mxu0
      %v526 = vadd.f32 %v261, %v525
      %v527 = vpop.f32.mrf.mxu0
      %528 = vmatprep.mubr.bf16.mxu0 0
      %529 = vmatmul.mubr.bf16.gmra.mxu0 %v399
      %v530 = vpop.f32.mrf.mxu0
      %v531 = vadd.f32 %v261, %v530
      %v532 = vpop.f32.mrf.mxu0
      %v533 = vpop.f32.mrf.mxu0
      %v534 = vadd.f32 %v261, %v533
      %v535 = vpop.f32.mrf.mxu0
      %536 = vmatprep.mubr.bf16.mxu0 0
      %537 = vmatmul.mubr.bf16.gmra.mxu0 %v402
      %v538 = vpop.f32.mrf.mxu0
      %v539 = vadd.f32 %v261, %v538
      %v540 = vpop.f32.mrf.mxu0
      %v541 = vpop.f32.mrf.mxu0
      %v542 = vadd.f32 %v261, %v541
      %v543 = vpop.f32.mrf.mxu0
      %544 = vmatprep.mubr.bf16.mxu0 0
      %545 = vmatmul.mubr.bf16.gmra.mxu0 %v405
      %v546 = vpop.f32.mrf.mxu0
      %v547 = vadd.f32 %v261, %v546
      %v548 = vpop.f32.mrf.mxu0
      %v549 = vpop.f32.mrf.mxu0
      %v550 = vadd.f32 %v261, %v549
      %v551 = vpop.f32.mrf.mxu0
      %552 = vmatprep.mubr.bf16.mxu0 0
      %553 = vmatmul.mubr.bf16.gmra.mxu0 %v408
      %v554 = vpop.f32.mrf.mxu0
      %v555 = vadd.f32 %v261, %v554
      %v556 = vpop.f32.mrf.mxu0
      %v557 = vpop.f32.mrf.mxu0
      %v558 = vadd.f32 %v261, %v557
      %v559 = vpop.f32.mrf.mxu0
      %560 = vmatprep.mubr.bf16.mxu0 0
      %561 = vmatmul.mubr.bf16.gmra.mxu0 %v411
      %v562 = vpop.f32.mrf.mxu0
      %v563 = vadd.f32 %v261, %v562
      %v564 = vpop.f32.mrf.mxu0
      %v565 = vpop.f32.mrf.mxu0
      %v566 = vadd.f32 %v261, %v565
      %v567 = vpop.f32.mrf.mxu0
      %568 = vmatprep.mubr.bf16.mxu0 0
      %569 = vmatmul.mubr.bf16.gmra.mxu0 %v414
      %v570 = vpop.f32.mrf.mxu0
      %v571 = vadd.f32 %v261, %v570
      %v572 = vpop.f32.mrf.mxu0
      %v573 = vpop.f32.mrf.mxu0
      %v574 = vadd.f32 %v261, %v573
      %v575 = vpop.f32.mrf.mxu0
      %576 = vdwg.mxu0
      %vm577 = vcmp.gt.f32.partialorder %v451, 0.0
      %vm578 = vcmp.gt.f32.partialorder %v454, 0.0
      %vm579 = vcmp.gt.f32.partialorder %v459, 0.0
      %vm580 = vcmp.gt.f32.partialorder %v462, 0.0
      %vm581 = vcmp.gt.f32.partialorder %v467, 0.0
      %vm582 = vcmp.gt.f32.partialorder %v470, 0.0
      %vm583 = vcmp.gt.f32.partialorder %v475, 0.0
      %vm584 = vcmp.gt.f32.partialorder %v478, 0.0
      %vm585 = vcmp.gt.f32.partialorder %v483, 0.0
      %vm586 = vcmp.gt.f32.partialorder %v486, 0.0
      %vm587 = vcmp.gt.f32.partialorder %v491, 0.0
      %vm588 = vcmp.gt.f32.partialorder %v494, 0.0
      %vm589 = vcmp.gt.f32.partialorder %v499, 0.0
      %vm590 = vcmp.gt.f32.partialorder %v502, 0.0
      %vm591 = vcmp.gt.f32.partialorder %v507, 0.0
      %vm592 = vcmp.gt.f32.partialorder %v510, 0.0
      %vm593 = vcmp.gt.f32.partialorder %v515, 0.0
      %vm594 = vcmp.gt.f32.partialorder %v518, 0.0
      %vm595 = vcmp.gt.f32.partialorder %v523, 0.0
      %vm596 = vcmp.gt.f32.partialorder %v526, 0.0
      %vm597 = vcmp.gt.f32.partialorder %v531, 0.0
      %vm598 = vcmp.gt.f32.partialorder %v534, 0.0
      %vm599 = vcmp.gt.f32.partialorder %v539, 0.0
      %vm600 = vcmp.gt.f32.partialorder %v542, 0.0
      %vm601 = vcmp.gt.f32.partialorder %v547, 0.0
      %vm602 = vcmp.gt.f32.partialorder %v550, 0.0
      %vm603 = vcmp.gt.f32.partialorder %v555, 0.0
      %vm604 = vcmp.gt.f32.partialorder %v558, 0.0
      %vm605 = vcmp.gt.f32.partialorder %v563, 0.0
      %vm606 = vcmp.gt.f32.partialorder %v566, 0.0
      %vm607 = vcmp.gt.f32.partialorder %v571, 0.0
      %vm608 = vcmp.gt.f32.partialorder %v574, 0.0
      %v609 = vmul.f32 %v451, 0.2
      %v610 = vmul.f32 %v454, 0.2
      %v611 = vmul.f32 %v459, 0.2
      %v612 = vmul.f32 %v462, 0.2
      %v613 = vmul.f32 %v467, 0.2
      %v614 = vmul.f32 %v470, 0.2
      %v615 = vmul.f32 %v475, 0.2
      %v616 = vmul.f32 %v478, 0.2
      %v617 = vmul.f32 %v483, 0.2
      %v618 = vmul.f32 %v486, 0.2
      %v619 = vmul.f32 %v491, 0.2
      %v620 = vmul.f32 %v494, 0.2
      %v621 = vmul.f32 %v499, 0.2
      %v622 = vmul.f32 %v502, 0.2
      %v623 = vmul.f32 %v507, 0.2
      %v624 = vmul.f32 %v510, 0.2
      %v625 = vmul.f32 %v515, 0.2
      %v626 = vmul.f32 %v518, 0.2
      %v627 = vmul.f32 %v523, 0.2
      %v628 = vmul.f32 %v526, 0.2
      %v629 = vmul.f32 %v531, 0.2
      %v630 = vmul.f32 %v534, 0.2
      %v631 = vmul.f32 %v539, 0.2
      %v632 = vmul.f32 %v542, 0.2
      %v633 = vmul.f32 %v547, 0.2
      %v634 = vmul.f32 %v550, 0.2
      %v635 = vmul.f32 %v555, 0.2
      %v636 = vmul.f32 %v558, 0.2
      %v637 = vmul.f32 %v563, 0.2
      %v638 = vmul.f32 %v566, 0.2
      %v639 = vmul.f32 %v571, 0.2
      %v640 = vmul.f32 %v574, 0.2
      %v641 = vsel %vm577, %v451, %v609
      %v642 = vsel %vm578, %v454, %v610
      %v643 = vsel %vm579, %v459, %v611
      %v644 = vsel %vm580, %v462, %v612
      %v645 = vsel %vm581, %v467, %v613
      %v646 = vsel %vm582, %v470, %v614
      %v647 = vsel %vm583, %v475, %v615
      %v648 = vsel %vm584, %v478, %v616
      %v649 = vsel %vm585, %v483, %v617
      %v650 = vsel %vm586, %v486, %v618
      %v651 = vsel %vm587, %v491, %v619
      %v652 = vsel %vm588, %v494, %v620
      %v653 = vsel %vm589, %v499, %v621
      %v654 = vsel %vm590, %v502, %v622
      %v655 = vsel %vm591, %v507, %v623
      %v656 = vsel %vm592, %v510, %v624
      %v657 = vsel %vm593, %v515, %v625
      %v658 = vsel %vm594, %v518, %v626
      %v659 = vsel %vm595, %v523, %v627
      %v660 = vsel %vm596, %v526, %v628
      %v661 = vsel %vm597, %v531, %v629
      %v662 = vsel %vm598, %v534, %v630
      %v663 = vsel %vm599, %v539, %v631
      %v664 = vsel %vm600, %v542, %v632
      %v665 = vsel %vm601, %v547, %v633
      %v666 = vsel %vm602, %v550, %v634
      %v667 = vsel %vm603, %v555, %v635
      %v668 = vsel %vm604, %v558, %v636
      %v669 = vsel %vm605, %v563, %v637
      %v670 = vsel %vm606, %v566, %v638
      %v671 = vsel %vm607, %v571, %v639
      %v672 = vsel %vm608, %v574, %v640
      %v673 = vpack.c.bf16 %v642, %v641
      %v674 = vpack.c.bf16 %v644, %v643
      %v675 = vpack.c.bf16 %v646, %v645
      %v676 = vpack.c.bf16 %v648, %v647
      %v677 = vpack.c.bf16 %v650, %v649
      %v678 = vpack.c.bf16 %v652, %v651
      %v679 = vpack.c.bf16 %v654, %v653
      %v680 = vpack.c.bf16 %v656, %v655
      %v681 = vpack.c.bf16 %v658, %v657
      %v682 = vpack.c.bf16 %v660, %v659
      %v683 = vpack.c.bf16 %v662, %v661
      %v684 = vpack.c.bf16 %v664, %v663
      %v685 = vpack.c.bf16 %v666, %v665
      %v686 = vpack.c.bf16 %v668, %v667
      %v687 = vpack.c.bf16 %v670, %v669
      %v688 = vpack.c.bf16 %v672, %v671
      %v705 = vunpack.c.l.b16 %v673
      %v706 = vunpack.c.h.b16 %v673
      %v707 = vunpack.c.l.b16 %v674
      %v708 = vunpack.c.h.b16 %v674
      %v709 = vunpack.c.l.b16 %v675
      %v710 = vunpack.c.h.b16 %v675
      %v711 = vunpack.c.l.b16 %v676
      %v712 = vunpack.c.h.b16 %v676
      %v713 = vunpack.c.l.b16 %v677
      %v714 = vunpack.c.h.b16 %v677
      %v715 = vunpack.c.l.b16 %v678
      %v716 = vunpack.c.h.b16 %v678
      %v717 = vunpack.c.l.b16 %v679
      %v718 = vunpack.c.h.b16 %v679
      %v719 = vunpack.c.l.b16 %v680
      %v720 = vunpack.c.h.b16 %v680
      %v721 = vunpack.c.l.b16 %v681
      %v722 = vunpack.c.h.b16 %v681
      %v723 = vunpack.c.l.b16 %v682
      %v724 = vunpack.c.h.b16 %v682
      %v725 = vunpack.c.l.b16 %v683
      %v726 = vunpack.c.h.b16 %v683
      %v727 = vunpack.c.l.b16 %v684
      %v728 = vunpack.c.h.b16 %v684
      %v729 = vunpack.c.l.b16 %v685
      %v730 = vunpack.c.h.b16 %v685
      %v731 = vunpack.c.l.b16 %v686
      %v732 = vunpack.c.h.b16 %v686
      %v733 = vunpack.c.l.b16 %v687
      %v734 = vunpack.c.h.b16 %v687
      %v735 = vunpack.c.l.b16 %v688
      %v736 = vunpack.c.h.b16 %v688
      %v737 = vpack.c.b16 %v705, %v705
      %v738 = vpack.c.b16 %v706, %v706
      %v739 = vpack.c.b16 %v707, %v707
      %v740 = vpack.c.b16 %v708, %v708
      %v741 = vpack.c.b16 %v709, %v709
      %v742 = vpack.c.b16 %v710, %v710
      %v743 = vpack.c.b16 %v711, %v711
      %v744 = vpack.c.b16 %v712, %v712
      %v745 = vpack.c.b16 %v713, %v713
      %v746 = vpack.c.b16 %v714, %v714
      %v747 = vpack.c.b16 %v715, %v715
      %v748 = vpack.c.b16 %v716, %v716
      %v749 = vpack.c.b16 %v717, %v717
      %v750 = vpack.c.b16 %v718, %v718
      %v751 = vpack.c.b16 %v719, %v719
      %v752 = vpack.c.b16 %v720, %v720
      %v753 = vpack.c.b16 %v721, %v721
      %v754 = vpack.c.b16 %v722, %v722
      %v755 = vpack.c.b16 %v723, %v723
      %v756 = vpack.c.b16 %v724, %v724
      %v757 = vpack.c.b16 %v725, %v725
      %v758 = vpack.c.b16 %v726, %v726
      %v759 = vpack.c.b16 %v727, %v727
      %v760 = vpack.c.b16 %v728, %v728
      %v761 = vpack.c.b16 %v729, %v729
      %v762 = vpack.c.b16 %v730, %v730
      %v763 = vpack.c.b16 %v731, %v731
      %v764 = vpack.c.b16 %v732, %v732
      %v765 = vpack.c.b16 %v733, %v733
      %v766 = vpack.c.b16 %v734, %v734
      %v767 = vpack.c.b16 %v735, %v735
      %v768 = vpack.c.b16 %v736, %v736
      %801 = vst [vmem:[%s213] sm:$0xf] %v737
      %802 = vst [vmem:[%s213 + $0x4] sm:$0xf] %v738
      %803 = vst [vmem:[%s213 + $0x8] sm:$0xf] %v739
      %804 = vst [vmem:[%s213 + $0xc] sm:$0xf] %v740
      %805 = vst [vmem:[%s213 + $0x10] sm:$0xf] %v741
      %806 = vst [vmem:[%s213 + $0x14] sm:$0xf] %v742
      %807 = vst [vmem:[%s213 + $0x18] sm:$0xf] %v743
      %808 = vst [vmem:[%s213 + $0x1c] sm:$0xf] %v744
      %809 = vst [vmem:[%s213 + $0x20] sm:$0xf] %v745
      %810 = vst [vmem:[%s213 + $0x24] sm:$0xf] %v746
      %811 = vst [vmem:[%s213 + $0x28] sm:$0xf] %v747
      %812 = vst [vmem:[%s213 + $0x2c] sm:$0xf] %v748
      %813 = vst [vmem:[%s213 + $0x30] sm:$0xf] %v749
      %814 = vst [vmem:[%s213 + $0x34] sm:$0xf] %v750
      %815 = vst [vmem:[%s213 + $0x38] sm:$0xf] %v751
      %816 = vst [vmem:[%s213 + $0x3c] sm:$0xf] %v752
      %817 = vst [vmem:[%s213 + $0x40] sm:$0xf] %v753
      %818 = vst [vmem:[%s213 + $0x44] sm:$0xf] %v754
      %819 = vst [vmem:[%s213 + $0x48] sm:$0xf] %v755
      %820 = vst [vmem:[%s213 + $0x4c] sm:$0xf] %v756
      %821 = vst [vmem:[%s213 + $0x50] sm:$0xf] %v757
      %822 = vst [vmem:[%s213 + $0x54] sm:$0xf] %v758
      %823 = vst [vmem:[%s213 + $0x58] sm:$0xf] %v759
      %824 = vst [vmem:[%s213 + $0x5c] sm:$0xf] %v760
      %825 = vst [vmem:[%s213 + $0x60] sm:$0xf] %v761
      %826 = vst [vmem:[%s213 + $0x64] sm:$0xf] %v762
      %827 = vst [vmem:[%s213 + $0x68] sm:$0xf] %v763
      %828 = vst [vmem:[%s213 + $0x6c] sm:$0xf] %v764
      %829 = vst [vmem:[%s213 + $0x70] sm:$0xf] %v765
      %830 = vst [vmem:[%s213 + $0x74] sm:$0xf] %v766
      %831 = vst [vmem:[%s213 + $0x78] sm:$0xf] %v767
      %832 = vst [vmem:[%s213 + $0x7c] sm:$0xf] %v768
      %s833 = smul.u32 16, %s19
      %p834 = scmp.lt.s32.totalorder %s18, 1
      %s835 = scalar_select %p834, %s18, 1
      %p836 = scmp.lt.s32.totalorder %s833, 15
      %s837 = scalar_select %p836, %s833, 15
      %s838 = smul.addr %s837, 2
      %s839 = smul.addr %s835, 32
      %s840 = sadd.s32 %s838, %s839
      %s841 = smul.addr %s840, 4
      %s842 = scalar_lea.vmem %s3, %s841
      // Predicated region
      $region33: #{_lambda_.2} parent=31 // pred_check
        %p843 = pneg %p116
      $region34: #{_lambda_.2} parent=31 // pred_check_branch
        %845 = sbr.rel (%p843) target = $region36
      $region35: #{_lambda_.2} parent=31 // pred_region
        %s846 = smul.u32 16, %s19
      $region36: #{_lambda_.2} parent=31 // pred_fallthru
        _
    $region32: #{_lambda_.2} parent=5 // pred_fallthru
      _
    %p847 = scmp.le.s32.totalorder 2, %s9
    // Predicated region
    $region37: #{_lambda_.2} parent=5 // pred_check
      %p848 = pneg %p847
    $region38: #{_lambda_.2} parent=5 // pred_check_branch
      %850 = sbr.rel (%p848) target = $region40
    $region39: #{_lambda_.2} parent=5 // pred_region
      %s851 = ssub.s32 %s9, 2
      // Predicated region
      $region41: #{_lambda_.2} parent=39 // pred_check
        %p852 = pneg %p122
      $region42: #{_lambda_.2} parent=39 // pred_check_branch
        %854 = sbr.rel (%p852) target = $region44
      $region43: #{_lambda_.2} parent=39 // pred_region
        %s855 = smul.u32 16, %s21
        %p856 = scmp.lt.s32.totalorder %s20, 1
        %s857 = scalar_select %p856, %s20, 1
        %p858 = scmp.lt.s32.totalorder %s855, 15
        %s859 = scalar_select %p858, %s855, 15
        %s860 = smul.addr %s859, 2
        %s861 = smul.addr %s857, 32
        %s862 = sadd.s32 %s860, %s861
        %s863 = smul.addr %s862, 4
        %s864 = scalar_lea.vmem %s3, %s863
      $region44: #{_lambda_.2} parent=39 // pred_fallthru
        _
    $region40: #{_lambda_.2} parent=5 // pred_fallthru
      _
  $region6: #{_lambda_.2} parent=0 // loop_footer
    %s13 = sadd.s32 1, %s9
  $region7: #{_lambda_.2} parent=0 // loop_footer_branch
    %8 = sbr.rel target = $region3
  $region8: #{_lambda_.2} parent=0 // loop_exit
    _

// kernel: _lambda_.3
$region0: #{_lambda_.3}
  #allocation0 [shape = 'u32[]', space=smem, size = 0x4, offset = 0x4, fixed_abs, tag = 'smem constant byte address 0x4 - core index']
  #allocation1 [shape = 'u32[144,128]{1,0:T(1,128)}', space=vmem, size = 0x12000, scoped, tag = 'internal scratch']
  %s0 = inlined_call_operand.vmem [shape: bf16[2,8,8,128], index: 0, kind: input, shape index: {}]
  %s1 = inlined_call_operand.vmem [shape: bf16[128,128], index: 1, kind: input, shape index: {}]
  %s2 = inlined_call_operand.vmem [shape: f32[1,128], index: 2, kind: input, shape index: {}]
  %s3 = inlined_call_operand.vmem [shape: bf16[2,8,8,128], index: 3, kind: output, shape index: {}]
  %s4 = sld [smem:[#allocation0]]
  $region45: #{_lambda_.3} parent=0
    _
  %s6 = ssub.s32 1, %s4
  %s7 = scalar_select 0, %s6, %s4
  loop: start=0, step=1, limit=4
  $region2: #{_lambda_.3} parent=0 // loop_pre_header
    _
  $region3: #{_lambda_.3} parent=0 // loop_header
    %s9 = sphi 0, %s13
    %p10 = scmp.ge.s32.totalorder %s9, 4
    %s16 = sphi 0, %s28
    %s17 = sphi 0, %s24
    %s18 = sphi 0, %s16
    %s19 = sphi 0, %s17
    %s20 = sphi 0, %s18
    %s21 = sphi 0, %s19
    %s33 = sphi 0, %s35
    %s36 = sphi 0, %s33
    %s37 = sphi 0, %s36
    %s53 = sphi 0, %s37
    %s57 = sphi 0, %s57
    %s59 = sphi 0, %s57
    %s60 = sphi 0, %s59
    %s74 = sphi 0, %s60
    %s78 = sphi 0, %s78
    %s80 = sphi 0, %s78
    %s81 = sphi 0, %s80
    %s95 = sphi 0, %s81
    %s103 = sphi 0, %s105
    %s106 = sphi 0, %s103
    %s107 = sphi 0, %s106
    %s123 = sphi 0, %s107
  $region4: #{_lambda_.3} parent=0 // loop_header_branch
    %12 = sbr.rel (%p10) target = $region8
  $region5: #{_lambda_.3} parent=0 // loop_body
    %s14 = ssub.s32 %s9, 1
    %s15 = ssub.s32 %s9, 2
    %s22 = sadd.s32 1, %s17
    %p23 = scmp.ge.s32.totalorder %s22, 1
    %s24 = scalar_select %p23, 0, %s22
    %s25 = sadd.s32 1, %s16
    %s26 = scalar_select %p23, %s25, %s16
    %p27 = scmp.ge.s32.totalorder %s26, 2
    %s28 = scalar_select %p27, 0, %s26
    %s29 = ssub.s32 %s16, %s28
    %s30 = ssub.s32 %s17, %s24
    %s31 = sor.u32 %s29, %s30
    %p32 = scmp.eq.s32.totalorder %s31, 0
    %s34 = sadd.s32 %s33, 1
    %s35 = scalar_select %p32, %s33, %s34
    %p38 = pneg %p32
    %p39 = scmp.eq.s32.totalorder %s9, 1
    %p40 = por %p38, %p39
    %p41 = scmp.ne.s32.totalorder %s33, %s36
    %p42 = scmp.eq.s32.totalorder %s9, 0
    %p43 = por %p41, %p42
    %p44 = scmp.ne.s32.totalorder %s33, %s36
    %p45 = scmp.eq.s32.totalorder %s14, 1
    %p46 = por %p44, %p45
    %p47 = scmp.ne.s32.totalorder %s36, %s37
    %p48 = scmp.eq.s32.totalorder %s14, 0
    %p49 = por %p47, %p48
    %p50 = scmp.ne.s32.totalorder %s36, %s37
    %p51 = scmp.eq.s32.totalorder %s15, 1
    %p52 = por %p50, %p51
    %p54 = scmp.ne.s32.totalorder %s37, %s53
    %p55 = scmp.eq.s32.totalorder %s15, 0
    %p56 = por %p54, %p55
    %s58 = sadd.s32 %s57, 1
    %p61 = scmp.eq.s32.totalorder %s9, 1
    %p62 = scmp.ne.s32.totalorder %s57, %s59
    %p63 = scmp.eq.s32.totalorder %s9, 0
    %p64 = por %p62, %p63
    %p65 = scmp.ne.s32.totalorder %s57, %s59
    %p66 = scmp.eq.s32.totalorder %s14, 1
    %p67 = por %p65, %p66
    %p68 = scmp.ne.s32.totalorder %s59, %s60
    %p69 = scmp.eq.s32.totalorder %s14, 0
    %p70 = por %p68, %p69
    %p71 = scmp.ne.s32.totalorder %s59, %s60
    %p72 = scmp.eq.s32.totalorder %s15, 1
    %p73 = por %p71, %p72
    %p75 = scmp.ne.s32.totalorder %s60, %s74
    %p76 = scmp.eq.s32.totalorder %s15, 0
    %p77 = por %p75, %p76
    %s79 = sadd.s32 %s78, 1
    %p82 = scmp.eq.s32.totalorder %s9, 1
    %p83 = scmp.ne.s32.totalorder %s78, %s80
    %p84 = scmp.eq.s32.totalorder %s9, 0
    %p85 = por %p83, %p84
    %p86 = scmp.ne.s32.totalorder %s78, %s80
    %p87 = scmp.eq.s32.totalorder %s14, 1
    %p88 = por %p86, %p87
    %p89 = scmp.ne.s32.totalorder %s80, %s81
    %p90 = scmp.eq.s32.totalorder %s14, 0
    %p91 = por %p89, %p90
    %p92 = scmp.ne.s32.totalorder %s80, %s81
    %p93 = scmp.eq.s32.totalorder %s15, 1
    %p94 = por %p92, %p93
    %p96 = scmp.ne.s32.totalorder %s81, %s95
    %p97 = scmp.eq.s32.totalorder %s15, 0
    %p98 = por %p96, %p97
    %s99 = ssub.s32 %s16, %s28
    %s100 = ssub.s32 %s17, %s24
    %s101 = sor.u32 %s99, %s100
    %p102 = scmp.eq.s32.totalorder %s101, 0
    %s104 = sadd.s32 %s103, 1
    %s105 = scalar_select %p102, %s103, %s104
    %p108 = pneg %p102
    %p109 = scmp.eq.s32.totalorder %s9, 1
    %p110 = por %p108, %p109
    %p111 = scmp.ne.s32.totalorder %s103, %s106
    %p112 = scmp.eq.s32.totalorder %s9, 0
    %p113 = por %p111, %p112
    %p114 = scmp.ne.s32.totalorder %s103, %s106
    %p115 = scmp.eq.s32.totalorder %s14, 1
    %p116 = por %p114, %p115
    %p117 = scmp.ne.s32.totalorder %s106, %s107
    %p118 = scmp.eq.s32.totalorder %s14, 0
    %p119 = por %p117, %p118
    %p120 = scmp.ne.s32.totalorder %s106, %s107
    %p121 = scmp.eq.s32.totalorder %s15, 1
    %p122 = por %p120, %p121
    %p124 = scmp.ne.s32.totalorder %s107, %s123
    %p125 = scmp.eq.s32.totalorder %s15, 0
    %p126 = por %p124, %p125
    %p127 = scmp.le.s32.totalorder 1, %s9
    %p128 = scmp.lt.s32.totalorder %s9, 3
    %p129 = pnand %p127, %p128
    %p130 = pneg %p129
    // Predicated region
    $region9: #{_lambda_.3} parent=5 // pred_check
      _
    $region10: #{_lambda_.3} parent=5 // pred_check_branch
      %132 = sbr.rel (%p129) target = $region12
    $region11: #{_lambda_.3} parent=5 // pred_region
      %s133 = ssub.s32 %s9, 1
      // Predicated region
      $region13: #{_lambda_.3} parent=11 // pred_check
        %p134 = pneg %p70
      $region14: #{_lambda_.3} parent=11 // pred_check_branch
        %136 = sbr.rel (%p134) target = $region16
      $region15: #{_lambda_.3} parent=11 // pred_region
        _
      $region16: #{_lambda_.3} parent=11 // pred_fallthru
        _
      // Predicated region
      $region17: #{_lambda_.3} parent=11 // pred_check
        %p137 = pneg %p91
      $region18: #{_lambda_.3} parent=11 // pred_check_branch
        %139 = sbr.rel (%p137) target = $region20
      $region19: #{_lambda_.3} parent=11 // pred_region
        _
      $region20: #{_lambda_.3} parent=11 // pred_fallthru
        _
    $region12: #{_lambda_.3} parent=5 // pred_fallthru
      _
    %p140 = scmp.lt.s32.totalorder %s9, 2
    // Predicated region
    $region21: #{_lambda_.3} parent=5 // pred_check
      %p141 = pneg %p140
    $region22: #{_lambda_.3} parent=5 // pred_check_branch
      %143 = sbr.rel (%p141) target = $region24
    $region23: #{_lambda_.3} parent=5 // pred_region
      // Predicated region
      $region25: #{_lambda_.3} parent=23 // pred_check
        %p144 = pneg %p43
      $region26: #{_lambda_.3} parent=23 // pred_check_branch
        %146 = sbr.rel (%p144) target = $region28
      $region27: #{_lambda_.3} parent=23 // pred_region
        %s147 = smul.u32 8, %s17
        %p148 = scmp.lt.s32.totalorder %s16, 1
        %s149 = scalar_select %p148, %s16, 1
        %p150 = scmp.lt.s32.totalorder %s147, 7
        %s151 = scalar_select %p150, %s147, 7
        %s152 = smul.addr %s149, 8
        %s153 = sadd.s32 %s151, %s152
        %s154 = smul.addr %s153, 4
        %s155 = scalar_lea.vmem %s0, %s154
        %s156 = smul.u32 8, %s17
      $region28: #{_lambda_.3} parent=23 // pred_fallthru
        _
    $region24: #{_lambda_.3} parent=5 // pred_fallthru
      _
    %p157 = scmp.le.s32.totalorder 1, %s9
    %p158 = scmp.lt.s32.totalorder %s9, 3
    %p159 = pnand %p157, %p158
    %p160 = pneg %p159
    // Predicated region
    $region29: #{_lambda_.3} parent=5 // pred_check
      _
    $region30: #{_lambda_.3} parent=5 // pred_check_branch
      %162 = sbr.rel (%p159) target = $region32
    $region31: #{_lambda_.3} parent=5 // pred_region
      %s163 = ssub.s32 %s9, 1
      %s164 = smul.u32 8, %s19
      %p165 = scmp.lt.s32.totalorder %s18, 1
      %s166 = scalar_select %p165, %s18, 1
      %p167 = scmp.lt.s32.totalorder %s164, 7
      %s168 = scalar_select %p167, %s164, 7
      %s169 = smul.addr %s166, 8
      %s170 = sadd.s32 %s168, %s169
      %s171 = smul.addr %s170, 4
      %s172 = scalar_lea.vmem %s0, %s171
      %p173 = pneg %p49
      %p174 = pneg %p46
      %p175 = pneg %p70
      %p176 = pneg %p67
      %p177 = pneg %p91
      %p178 = pneg %p88
      %p179 = pneg %p119
      %p180 = pneg %p116
      %s181 = smul.u32 8, %s19
      %p182 = scmp.lt.s32.totalorder %s18, 1
      %s183 = scalar_select %p182, %s18, 1
      %p184 = scmp.lt.s32.totalorder %s181, 7
      %s185 = scalar_select %p184, %s181, 7
      %s186 = smul.addr %s183, 8
      %s187 = sadd.s32 %s185, %s186
      %s188 = smul.addr %s187, 4
      %s189 = scalar_lea.vmem %s3, %s188
      %s190 = smul.u32 8, %s19
      %p191 = scmp.lt.s32.totalorder %s18, 1
      %s192 = scalar_select %p191, %s18, 1
      %p193 = scmp.lt.s32.totalorder %s190, 7
      %s194 = scalar_select %p193, %s190, 7
      %s195 = smul.addr %s192, 8
      %s196 = sadd.s32 %s194, %s195
      %s197 = smul.addr %s196, 4
      %s198 = scalar_lea.vmem %s0, %s197
      %s199 = smul.u32 8, %s19
      %s200 = smul.u32 8, %s19
      %p201 = scmp.lt.s32.totalorder %s18, 1
      %s202 = scalar_select %p201, %s18, 1
      %p203 = scmp.lt.s32.totalorder %s200, 7
      %s204 = scalar_select %p203, %s200, 7
      %s205 = smul.addr %s202, 8
      %s206 = sadd.s32 %s204, %s205
      %s207 = smul.addr %s206, 4
      %s208 = scalar_lea.vmem %s3, %s207
      %s209 = smul.u32 8, %s19
      %v211 = vld [vmem:[%s198] sm:$0xf]
      %v212 = vld [vmem:[%s198 + $0x4] sm:$0xf]
      %v213 = vld [vmem:[%s198 + $0x8] sm:$0xf]
      %v214 = vld [vmem:[%s198 + $0xc] sm:$0xf]
      %v215 = vld [vmem:[%s198 + $0x10] sm:$0xf]
      %v216 = vld [vmem:[%s198 + $0x14] sm:$0xf]
      %v217 = vld [vmem:[%s198 + $0x18] sm:$0xf]
      %v218 = vld [vmem:[%s198 + $0x1c] sm:$0xf]
      %v219 = vld [vmem:[%s1] sm:$0xf]
      %v220 = vld [vmem:[%s1 + $0x4] sm:$0xf]
      %v221 = vld [vmem:[%s1 + $0x8] sm:$0xf]
      %v222 = vld [vmem:[%s1 + $0xc] sm:$0xf]
      %v223 = vld [vmem:[%s1 + $0x10] sm:$0xf]
      %v224 = vld [vmem:[%s1 + $0x14] sm:$0xf]
      %v225 = vld [vmem:[%s1 + $0x18] sm:$0xf]
      %v226 = vld [vmem:[%s1 + $0x1c] sm:$0xf]
      %v227 = vld [vmem:[%s1 + $0x20] sm:$0xf]
      %v228 = vld [vmem:[%s1 + $0x24] sm:$0xf]
      %v229 = vld [vmem:[%s1 + $0x28] sm:$0xf]
      %v230 = vld [vmem:[%s1 + $0x2c] sm:$0xf]
      %v231 = vld [vmem:[%s1 + $0x30] sm:$0xf]
      %v232 = vld [vmem:[%s1 + $0x34] sm:$0xf]
      %v233 = vld [vmem:[%s1 + $0x38] sm:$0xf]
      %v234 = vld [vmem:[%s1 + $0x3c] sm:$0xf]
      %v235 = vld [vmem:[%s2] sm:$0x1]
      %v237 = vlaneseq
      %v238 = vshrl.u32 %v237, 7
      %v239 = vsub.s32 0, %v238
      %v240 = vrot.slane %v235, %v239
      %v250 = vunpack.c.l.b16 %v211
      %v251 = vunpack.c.l.b16 %v212
      %v252 = vunpack.c.l.b16 %v213
      %v253 = vunpack.c.l.b16 %v214
      %v254 = vunpack.c.l.b16 %v215
      %v255 = vunpack.c.l.b16 %v216
      %v256 = vunpack.c.l.b16 %v217
      %v257 = vunpack.c.l.b16 %v218
      %v258 = vpack.c.b16 %v251, %v250
      %v259 = vpack.c.b16 %v253, %v252
      %v260 = vpack.c.b16 %v255, %v254
      %v261 = vpack.c.b16 %v257, %v256
      %v282 = vunpack.c.l.b16 %v219
      %v283 = vunpack.c.l.b16 %v220
      %v284 = vunpack.c.l.b16 %v221
      %v285 = vunpack.c.l.b16 %v222
      %v286 = vunpack.c.l.b16 %v223
      %v287 = vunpack.c.l.b16 %v224
      %v288 = vunpack.c.l.b16 %v225
      %v289 = vunpack.c.l.b16 %v226
      %v290 = vunpack.c.l.b16 %v227
      %v291 = vunpack.c.l.b16 %v228
      %v292 = vunpack.c.l.b16 %v229
      %v293 = vunpack.c.l.b16 %v230
      %v294 = vunpack.c.l.b16 %v231
      %v295 = vunpack.c.l.b16 %v232
      %v296 = vunpack.c.l.b16 %v233
      %v297 = vunpack.c.l.b16 %v234
      %v298 = vpack.c.b16 %v283, %v282
      %v299 = vpack.c.b16 %v285, %v284
      %v300 = vpack.c.b16 %v287, %v286
      %v301 = vpack.c.b16 %v289, %v288
      %v302 = vpack.c.b16 %v291, %v290
      %v303 = vpack.c.b16 %v293, %v292
      %v304 = vpack.c.b16 %v295, %v294
      %v305 = vpack.c.b16 %v297, %v296
      %314 = vmatprep.subr.bf16.mxu0 0
      %315 = vmatpush1.bf16.msra.mxu0 %v305
      %316 = vmatprep.subr.bf16.mxu0 0
      %317 = vmatpush1.bf16.msra.mxu0 %v304
      %318 = vmatprep.subr.bf16.mxu0 0
      %319 = vmatpush1.bf16.msra.mxu0 %v303
      %320 = vmatprep.subr.bf16.mxu0 0
      %321 = vmatpush1.bf16.msra.mxu0 %v302
      %322 = vmatprep.subr.bf16.mxu0 0
      %323 = vmatpush1.bf16.msra.mxu0 %v301
      %324 = vmatprep.subr.bf16.mxu0 0
      %325 = vmatpush1.bf16.msra.mxu0 %v300
      %326 = vmatprep.subr.bf16.mxu0 0
      %327 = vmatpush1.bf16.msra.mxu0 %v299
      %328 = vmatprep.subr.bf16.mxu0 0
      %329 = vmatpush1.bf16.msra.mxu0 %v298
      %330 = vmatprep.subr.bf16.mxu0 0
      %331 = vmatpush2.bf16.msra.mxu0 0
      %332 = vmatprep.subr.bf16.mxu0 0
      %333 = vmatpush2.bf16.msra.mxu0 0
      %334 = vmatprep.subr.bf16.mxu0 0
      %335 = vmatpush2.bf16.msra.mxu0 0
      %336 = vmatprep.subr.bf16.mxu0 0
      %337 = vmatpush2.bf16.msra.mxu0 0
      %338 = vmatprep.subr.bf16.mxu0 0
      %339 = vmatpush2.bf16.msra.mxu0 0
      %340 = vmatprep.subr.bf16.mxu0 0
      %341 = vmatpush2.bf16.msra.mxu0 0
      %342 = vmatprep.subr.bf16.mxu0 0
      %343 = vmatpush2.bf16.msra.mxu0 0
      %344 = vmatprep.subr.bf16.mxu0 0
      %345 = vmatpush2.bf16.msra.mxu0 0
      %346 = vmatprep.mubr.bf16.mxu0 0
      %347 = vmatmul.mubr.bf16.gmra.mxu0 %v258
      %v348 = vpop.f32.mrf.mxu0
      %v349 = vadd.f32 %v240, %v348
      %v350 = vpop.f32.mrf.mxu0
      %v351 = vpop.f32.mrf.mxu0
      %v352 = vadd.f32 %v240, %v351
      %v353 = vpop.f32.mrf.mxu0
      %354 = vmatprep.mubr.bf16.mxu0 0
      %355 = vmatmul.mubr.bf16.gmra.mxu0 %v259
      %v356 = vpop.f32.mrf.mxu0
      %v357 = vadd.f32 %v240, %v356
      %v358 = vpop.f32.mrf.mxu0
      %v359 = vpop.f32.mrf.mxu0
      %v360 = vadd.f32 %v240, %v359
      %v361 = vpop.f32.mrf.mxu0
      %362 = vmatprep.mubr.bf16.mxu0 0
      %363 = vmatmul.mubr.bf16.gmra.mxu0 %v260
      %v364 = vpop.f32.mrf.mxu0
      %v365 = vadd.f32 %v240, %v364
      %v366 = vpop.f32.mrf.mxu0
      %v367 = vpop.f32.mrf.mxu0
      %v368 = vadd.f32 %v240, %v367
      %v369 = vpop.f32.mrf.mxu0
      %370 = vmatprep.mubr.bf16.mxu0 0
      %371 = vmatmul.mubr.bf16.gmra.mxu0 %v261
      %v372 = vpop.f32.mrf.mxu0
      %v373 = vadd.f32 %v240, %v372
      %v374 = vpop.f32.mrf.mxu0
      %v375 = vpop.f32.mrf.mxu0
      %v376 = vadd.f32 %v240, %v375
      %v377 = vpop.f32.mrf.mxu0
      %378 = vdwg.mxu0
      %vm379 = vcmp.gt.f32.partialorder %v349, 0.0
      %vm380 = vcmp.gt.f32.partialorder %v352, 0.0
      %vm381 = vcmp.gt.f32.partialorder %v357, 0.0
      %vm382 = vcmp.gt.f32.partialorder %v360, 0.0
      %vm383 = vcmp.gt.f32.partialorder %v365, 0.0
      %vm384 = vcmp.gt.f32.partialorder %v368, 0.0
      %vm385 = vcmp.gt.f32.partialorder %v373, 0.0
      %vm386 = vcmp.gt.f32.partialorder %v376, 0.0
      %v387 = vmul.f32 %v349, 0.2
      %v388 = vmul.f32 %v352, 0.2
      %v389 = vmul.f32 %v357, 0.2
      %v390 = vmul.f32 %v360, 0.2
      %v391 = vmul.f32 %v365, 0.2
      %v392 = vmul.f32 %v368, 0.2
      %v393 = vmul.f32 %v373, 0.2
      %v394 = vmul.f32 %v376, 0.2
      %v395 = vsel %vm379, %v349, %v387
      %v396 = vsel %vm380, %v352, %v388
      %v397 = vsel %vm381, %v357, %v389
      %v398 = vsel %vm382, %v360, %v390
      %v399 = vsel %vm383, %v365, %v391
      %v400 = vsel %vm384, %v368, %v392
      %v401 = vsel %vm385, %v373, %v393
      %v402 = vsel %vm386, %v376, %v394
      %v403 = vpack.c.bf16 %v395, %v395
      %v404 = vpack.c.bf16 %v396, %v396
      %v405 = vpack.c.bf16 %v397, %v397
      %v406 = vpack.c.bf16 %v398, %v398
      %v407 = vpack.c.bf16 %v399, %v399
      %v408 = vpack.c.bf16 %v400, %v400
      %v409 = vpack.c.bf16 %v401, %v401
      %v410 = vpack.c.bf16 %v402, %v402
      %411 = vst [vmem:[%s208] sm:$0xf] %v403
      %412 = vst [vmem:[%s208 + $0x4] sm:$0xf] %v404
      %413 = vst [vmem:[%s208 + $0x8] sm:$0xf] %v405
      %414 = vst [vmem:[%s208 + $0xc] sm:$0xf] %v406
      %415 = vst [vmem:[%s208 + $0x10] sm:$0xf] %v407
      %416 = vst [vmem:[%s208 + $0x14] sm:$0xf] %v408
      %417 = vst [vmem:[%s208 + $0x18] sm:$0xf] %v409
      %418 = vst [vmem:[%s208 + $0x1c] sm:$0xf] %v410
      %s419 = smul.u32 8, %s19
      %p420 = scmp.lt.s32.totalorder %s18, 1
      %s421 = scalar_select %p420, %s18, 1
      %p422 = scmp.lt.s32.totalorder %s419, 7
      %s423 = scalar_select %p422, %s419, 7
      %s424 = smul.addr %s421, 8
      %s425 = sadd.s32 %s423, %s424
      %s426 = smul.addr %s425, 4
      %s427 = scalar_lea.vmem %s3, %s426
      // Predicated region
      $region33: #{_lambda_.3} parent=31 // pred_check
        %p428 = pneg %p116
      $region34: #{_lambda_.3} parent=31 // pred_check_branch
        %430 = sbr.rel (%p428) target = $region36
      $region35: #{_lambda_.3} parent=31 // pred_region
        %s431 = smul.u32 8, %s19
      $region36: #{_lambda_.3} parent=31 // pred_fallthru
        _
    $region32: #{_lambda_.3} parent=5 // pred_fallthru
      _
    %p432 = scmp.le.s32.totalorder 2, %s9
    // Predicated region
    $region37: #{_lambda_.3} parent=5 // pred_check
      %p433 = pneg %p432
    $region38: #{_lambda_.3} parent=5 // pred_check_branch
      %435 = sbr.rel (%p433) target = $region40
    $region39: #{_lambda_.3} parent=5 // pred_region
      %s436 = ssub.s32 %s9, 2
      // Predicated region
      $region41: #{_lambda_.3} parent=39 // pred_check
        %p437 = pneg %p122
      $region42: #{_lambda_.3} parent=39 // pred_check_branch
        %439 = sbr.rel (%p437) target = $region44
      $region43: #{_lambda_.3} parent=39 // pred_region
        %s440 = smul.u32 8, %s21
        %p441 = scmp.lt.s32.totalorder %s20, 1
        %s442 = scalar_select %p441, %s20, 1
        %p443 = scmp.lt.s32.totalorder %s440, 7
        %s444 = scalar_select %p443, %s440, 7
        %s445 = smul.addr %s442, 8
        %s446 = sadd.s32 %s444, %s445
        %s447 = smul.addr %s446, 4
        %s448 = scalar_lea.vmem %s3, %s447
      $region44: #{_lambda_.3} parent=39 // pred_fallthru
        _
    $region40: #{_lambda_.3} parent=5 // pred_fallthru
      _
  $region6: #{_lambda_.3} parent=0 // loop_footer
    %s13 = sadd.s32 1, %s9
  $region7: #{_lambda_.3} parent=0 // loop_footer_branch
    %8 = sbr.rel target = $region3
  $region8: #{_lambda_.3} parent=0 // loop_exit
    _

</llo_original>
